<compile_context>
chip_gen: v7x
topology: tpu7x:2x2x1
jax: 0.10.0
libtpu: 0.0.40
codegen_flags: <defaults>
</compile_context>

<pallas_src>
import functools

import jax
import jax.numpy as jnp
from jax.experimental import pallas as pl
from jax.experimental.pallas import tpu as pltpu

_MIB = 1024 * 1024


def _multi_tc_chip():
    """True for chips with >1 TensorCore per chip (v4 / v5p megacore, v7x)."""
    try:
        kind = jax.devices()[0].device_kind.lower()
    except Exception:
        return False
    return any(tag in kind for tag in ("v4", "v5p", "v7", "7x"))


def _mlp_sigmoid(avg, mx, w1, w2):
    """avg/mx: (R, C) f32; w1: (C, Cr); w2: (Cr, C).
    Returns sigmoid(fc2(relu(fc1(avg))) + fc2(relu(fc1(mx)))) without a concat."""
    w1f = w1.astype(jnp.float32)
    w2f = w2.astype(jnp.float32)

    def mlp(p):
        h = jnp.maximum(jnp.dot(p, w1f, preferred_element_type=jnp.float32), 0.0)
        return jnp.dot(h, w2f, preferred_element_type=jnp.float32)

    return jax.nn.sigmoid(mlp(avg) + mlp(mx))


# ----------------------------- Regime A: batch blocks -----------------------------
def _ca_kernel_batch(x_ref, w1_ref, w2_ref, o_ref, *, hw):
    # x_ref: (TN, C, HW); o_ref: (1, TN, C). Whole spatial extent per step.
    x = x_ref[...]
    avg = jnp.sum(x, axis=-1, dtype=jnp.float32) * (1.0 / hw)   # (TN, C) f32
    mx = jnp.max(x, axis=-1).astype(jnp.float32)                # (TN, C) f32
    att = _mlp_sigmoid(avg, mx, w1_ref[...], w2_ref[...])
    o_ref[...] = att[None].astype(o_ref.dtype)


# ----------------------------- Regime B: channel blocks ---------------------------
def _ca_kernel_ctile(x_ref, w1_ref, w2_ref, o_ref, avg_row, max_row, *, hw, tc):
    # x_ref: (1, TC, HW); o_ref: (1, 1, C); avg_row/max_row: (1, C) f32 scratch.
    c = pl.program_id(1)
    nc = pl.num_programs(1)

    x = x_ref[...]
    s = jnp.sum(x, axis=-1, dtype=jnp.float32) * (1.0 / hw)     # (1, TC)
    m = jnp.max(x, axis=-1).astype(jnp.float32)                 # (1, TC)
    off = pl.multiple_of(c * tc, 128)                           # tc is a 128-multiple
    avg_row[:, pl.ds(off, tc)] = s
    max_row[:, pl.ds(off, tc)] = m

    @pl.when(c == nc - 1)
    def _finalize():
        att = _mlp_sigmoid(avg_row[...], max_row[...], w1_ref[...], w2_ref[...])
        o_ref[...] = att[None].astype(o_ref.dtype)


# ----------------------------- Regime C: spatial chunks ---------------------------
def _ca_kernel_hwtile(x_ref, w1_ref, w2_ref, o_ref, sum_acc, max_acc,
                      *, hw, thw, has_tail):
    # x_ref: (1, C, THW); sum_acc/max_acc: (1, C) f32; o_ref: (1, 1, C).
    k = pl.program_id(1)
    nk = pl.num_programs(1)

    @pl.when(k == 0)
    def _init():
        sum_acc[...] = jnp.zeros_like(sum_acc)
        max_acc[...] = jnp.full_like(max_acc, -jnp.inf)

    x = x_ref[...]

    def _accumulate(xs, xm):
        sum_acc[...] += jnp.sum(xs, axis=-1, dtype=jnp.float32)
        max_acc[...] = jnp.maximum(max_acc[...],
                                   jnp.max(xm, axis=-1).astype(jnp.float32))

    if has_tail:
        # Mask only the (single) ragged last chunk; all other chunks stay on the
        # cheap unmasked path (keeps the kernel DMA-bound rather than VALU-bound).
        @pl.when(k < nk - 1)
        def _full_chunk():
            _accumulate(x, x)

        @pl.when(k == nk - 1)
        def _tail_chunk():
            lane = jax.lax.broadcasted_iota(jnp.int32, (1, 1, thw), 2)
            valid = hw - k * thw
            keep = lane < valid
            # Past-the-end lanes of the last block hold unspecified data:
            # mask BOTH reductions (no wrapper-side padding any more).
            # NOTE: -inf sentinel assumes a floating-point input dtype.
            xs = jnp.where(keep, x, jnp.zeros_like(x))
            xm = jnp.where(keep, x, jnp.full_like(x, -jnp.inf))
            _accumulate(xs, xm)
    else:
        _accumulate(x, x)

    @pl.when(k == nk - 1)
    def _finalize():
        avg = sum_acc[...] * (1.0 / hw)                          # divide by true HW
        att = _mlp_sigmoid(avg, max_acc[...], w1_ref[...], w2_ref[...])
        o_ref[...] = att[None].astype(o_ref.dtype)


def channel_attention(x, fc1_weight, fc2_weight, *, target_tile_bytes=6 * _MIB):
    """x: (N, C, H, W); fc1_weight: (C//16, C, 1, 1); fc2_weight: (C, C//16, 1, 1)
    (PyTorch Conv2d weight layouts). Returns attention map of shape (N, C, 1, 1)."""
    N, C, H, W = x.shape
    Cr = fc1_weight.shape[0]
    HW = H * W
    itemsize = jnp.dtype(x.dtype).itemsize
    slab_bytes = C * HW * itemsize          # one batch element, contiguous in HBM

    x_flat = x.reshape(N, C, HW)
    w1 = fc1_weight.reshape(Cr, C).T        # (C, Cr)
    w2 = fc2_weight.reshape(C, Cr).T        # (Cr, C)

    cost = pl.CostEstimate(
        flops=int(2 * N * C * HW + 4 * N * C * Cr),
        transcendentals=int(N * C),
        bytes_accessed=int(x_flat.size * itemsize
                           + w1.size * jnp.dtype(w1.dtype).itemsize
                           + w2.size * jnp.dtype(w2.dtype).itemsize
                           + N * C * itemsize),
    )

    if slab_bytes <= target_tile_bytes:
        # ---- Regime A: (TN, C, HW) blocks, single (parallel) batch grid axis. ----
        tn_fit = max(1, target_tile_bytes // slab_bytes)
        if _multi_tc_chip() and N > 1:
            tn = int(min(tn_fit, -(-N // 2)))     # keep >= 2 steps to feed both TCs
        else:
            tn = int(min(tn_fit, N))              # single-TC: use the full budget
        nb = -(-N // tn)
        block_bytes = tn * slab_bytes
        kernel = functools.partial(_ca_kernel_batch, hw=HW)
        grid = (nb,)
        in_specs = [
            pl.BlockSpec((tn, C, HW), lambda n: (n, 0, 0)),
            pl.BlockSpec((C, Cr), lambda n: (0, 0)),
            pl.BlockSpec((Cr, C), lambda n: (0, 0)),
        ]
        out_shape = jax.ShapeDtypeStruct((nb, tn, C), x.dtype)
        out_specs = pl.BlockSpec((1, tn, C), lambda n: (n, 0, 0))
        scratch_shapes = []
        dim_sem = ("parallel",)
        rows = nb * tn
    else:
        # Prefer contiguous channel tiling when a 128-multiple channel slice fits.
        tc = 0
        if C % 128 == 0:
            nc128 = C // 128
            for d in range(nc128, 0, -1):
                if nc128 % d == 0 and 128 * d * HW * itemsize <= target_tile_bytes:
                    tc = 128 * d
                    break
        if tc:
            # ---- Regime B: contiguous (1, TC, HW) blocks; channel axis inner. ----
            block_bytes = tc * HW * itemsize
            kernel = functools.partial(_ca_kernel_ctile, hw=HW, tc=tc)
            grid = (N, C // tc)
            in_specs = [
                pl.BlockSpec((1, tc, HW), lambda n, c: (n, c, 0)),
                pl.BlockSpec((C, Cr), lambda n, c: (0, 0)),
                pl.BlockSpec((Cr, C), lambda n, c: (0, 0)),
            ]
            out_shape = jax.ShapeDtypeStruct((N, 1, C), x.dtype)
            out_specs = pl.BlockSpec((1, 1, C), lambda n, c: (n, 0, 0))
            scratch_shapes = [pltpu.VMEM((1, C), jnp.float32),
                              pltpu.VMEM((1, C), jnp.float32)]
            dim_sem = ("parallel", "arbitrary")
            rows = N
        else:
            # ---- Regime C: (1, C, THW) spatial chunks (128-lane multiples). ----
            lanes_fit = max(128, (target_tile_bytes // (C * itemsize)) // 128 * 128)
            thw = HW if lanes_fit >= HW else int(lanes_fit)
            nk = -(-HW // thw)
            has_tail = (HW % thw) != 0
            block_bytes = C * thw * itemsize
            kernel = functools.partial(_ca_kernel_hwtile, hw=HW, thw=thw,
                                       has_tail=has_tail)
            grid = (N, nk)
            in_specs = [
                pl.BlockSpec((1, C, thw), lambda n, k: (n, 0, k)),
                pl.BlockSpec((C, Cr), lambda n, k: (0, 0)),
                pl.BlockSpec((Cr, C), lambda n, k: (0, 0)),
            ]
            out_shape = jax.ShapeDtypeStruct((N, 1, C), x.dtype)
            out_specs = pl.BlockSpec((1, 1, C), lambda n, k: (n, 0, 0))
            scratch_shapes = [pltpu.VMEM((1, C), jnp.float32),
                              pltpu.VMEM((1, C), jnp.float32)]
            dim_sem = ("parallel", "arbitrary")
            rows = N

    # Explicit scoped-VMEM budget: covers double/triple buffering of the enlarged
    # tiles on all generations (v5e's default scoped limit is only 16 MiB).
    vmem_limit = int(min(56 * _MIB, max(32 * _MIB, 3 * block_bytes + 2 * _MIB)))

    out = pl.pallas_call(
        kernel,
        out_shape=out_shape,
        grid_spec=pltpu.PrefetchScalarGridSpec(
            num_scalar_prefetch=0,
            grid=grid,
            in_specs=in_specs,
            out_specs=out_specs,
            scratch_shapes=scratch_shapes,
        ),
        compiler_params=pltpu.CompilerParams(
            dimension_semantics=dim_sem,
            vmem_limit_bytes=vmem_limit,
        ),
        cost_estimate=cost,
    )(x_flat, w1, w2)

    # Drop any out-of-bounds batch rows (written from unspecified data, but
    # row-independent through the MLP), then restore the PyTorch (N, C, 1, 1).
    out = out.reshape(rows, C)[:N]
    return out.reshape(N, C, 1, 1)


def _reference(x, fc1_weight, fc2_weight):
    """Pure-JAX reference mirroring the PyTorch forward."""
    N, C, H, W = x.shape
    Cr = fc1_weight.shape[0]
    w1 = fc1_weight.reshape(Cr, C)    # (Cr, C)
    w2 = fc2_weight.reshape(C, Cr)    # (C, Cr)

    avg = jnp.mean(x, axis=(2, 3))    # (N, C)
    mx = jnp.max(x, axis=(2, 3))      # (N, C)

    def mlp(p):
        return jnp.maximum(p @ w1.T, 0.0) @ w2.T

    out = jax.nn.sigmoid(mlp(avg) + mlp(mx))
    return out.reshape(N, C, 1, 1)


def _make_inputs(key, N, C, H, W):
    kx, k1, k2 = jax.random.split(key, 3)
    Cr = C // 16
    x = jax.random.normal(kx, (N, C, H, W), dtype=jnp.float32)
    fc1_w = jax.random.normal(k1, (Cr, C, 1, 1), dtype=jnp.float32) * (2.0 / C) ** 0.5
    fc2_w = jax.random.normal(k2, (C, Cr, 1, 1), dtype=jnp.float32) * (2.0 / Cr) ** 0.5
    return x, fc1_w, fc2_w


if __name__ == "__main__":
    key = jax.random.PRNGKey(0)
    k0, k1, k2, k3 = jax.random.split(key, 4)

    # Main case (Regime A): N=2, C=32 (module hard-codes C // 16 -> hidden=2), 16x16.
    x, w1, w2 = _make_inputs(k0, N=2, C=32, H=16, W=16)
    y = channel_attention(x, w1, w2)
    jax.block_until_ready(y)
    y_ref = _reference(x, w1, w2)
    assert y.shape == (2, 32, 1, 1)
    assert jnp.allclose(y, y_ref, atol=1e-5, rtol=1e-5), "mismatch (main case)"

    # Regime C: spatial chunking with a ragged tail (289 = 2*128 + 33), no wrapper pad.
    xb, w1b, w2b = _make_inputs(k1, N=3, C=32, H=17, W=17)
    yb = channel_attention(xb, w1b, w2b, target_tile_bytes=4096)
    jax.block_until_ready(yb)
    assert jnp.allclose(yb, _reference(xb, w1b, w2b), atol=1e-5, rtol=1e-5), \
        "mismatch (HW-chunked case)"

    # Regime A with a possibly partial last batch block (N=5).
    xc, w1c, w2c = _make_inputs(k2, N=5, C=32, H=4, W=4)
    yc = channel_attention(xc, w1c, w2c)
    jax.block_until_ready(yc)
    assert jnp.allclose(yc, _reference(xc, w1c, w2c), atol=1e-5, rtol=1e-5), \
        "mismatch (batch-blocked case)"

    # Regime B: contiguous channel tiling (C=256 -> TC=128, 2 channel blocks).
    xd, w1d, w2d = _make_inputs(k3, N=2, C=256, H=4, W=4)
    yd = channel_attention(xd, w1d, w2d, target_tile_bytes=8192)
    jax.block_until_ready(yd)
    assert jnp.allclose(yd, _reference(xd, w1d, w2d), atol=1e-5, rtol=1e-5), \
        "mismatch (C-tiled case)"

    print("KERNEL_OK")
</pallas_src>

<mosaic_0001>
module attributes {stable_mosaic.version = 11 : i64} {
  func.func @_ca_kernel_batch(%arg0: i32, %arg1: memref<2x32x256xf32, #tpu.memory_space<vmem>>, %arg2: memref<32x2xf32, #tpu.memory_space<vmem>>, %arg3: memref<2x32xf32, #tpu.memory_space<vmem>>, %arg4: memref<1x2x32xf32, #tpu.memory_space<vmem>>) attributes {dimension_semantics = [#tpu.dimension_semantics<parallel>], iteration_bounds = array<i64: 1>, scalar_prefetch = 0 : i64, scratch_operands = 0 : i64, tpu.core_type = #tpu.core_type<tc>, window_params = [{transform_indices = @transform_0, window_bounds = array<i64: 2, 32, 256>}, {pipeline_mode = #tpu.pipeline_mode<synchronous>, transform_indices = @transform_1, window_bounds = array<i64: 32, 2>}, {pipeline_mode = #tpu.pipeline_mode<synchronous>, transform_indices = @transform_2, window_bounds = array<i64: 2, 32>}, {transform_indices = @transform_3, window_bounds = array<i64: 1, 2, 32>}]} {
    %c0 = arith.constant 0 : index
    %c0_0 = arith.constant 0 : index
    %c0_1 = arith.constant 0 : index
    %0 = vector.load %arg1[%c0, %c0_0, %c0_1] : memref<2x32x256xf32, #tpu.memory_space<vmem>>, vector<2x32x256xf32>
    %cst = arith.constant dense<0.000000e+00> : vector<2x32xf32>
    %1 = vector.multi_reduction <add>, %0, %cst [2] : vector<2x32x256xf32> to vector<2x32xf32>
    %cst_2 = arith.constant 3.906250e-03 : f32
    %2 = vector.broadcast %cst_2 : f32 to vector<2x32xf32>
    %3 = arith.mulf %1, %2 : vector<2x32xf32>
    %cst_3 = arith.constant dense<0xFF800000> : vector<2x32xf32>
    %4 = vector.multi_reduction <maximumf>, %0, %cst_3 [2] : vector<2x32x256xf32> to vector<2x32xf32>
    %c0_4 = arith.constant 0 : index
    %c0_5 = arith.constant 0 : index
    %5 = vector.load %arg2[%c0_4, %c0_5] : memref<32x2xf32, #tpu.memory_space<vmem>>, vector<32x2xf32>
    %c0_6 = arith.constant 0 : index
    %c0_7 = arith.constant 0 : index
    %6 = vector.load %arg3[%c0_6, %c0_7] : memref<2x32xf32, #tpu.memory_space<vmem>>, vector<2x32xf32>
    %cst_8 = arith.constant dense<0.000000e+00> : vector<2x2xf32>
    %7 = tpu.matmul %3, %5, %cst_8 {dimension_numbers = #tpu.dot_dimension_numbers<[1], [0], [0], [1], [0, 0, 1, 1], [], []>} : vector<2x32xf32>, vector<32x2xf32>, vector<2x2xf32> -> vector<2x2xf32>
    %cst_9 = arith.constant 0.000000e+00 : f32
    %8 = vector.broadcast %cst_9 : f32 to vector<2x2xf32>
    %9 = arith.maximumf %7, %8 : vector<2x2xf32>
    %cst_10 = arith.constant dense<0.000000e+00> : vector<2x32xf32>
    %10 = tpu.matmul %9, %6, %cst_10 {dimension_numbers = #tpu.dot_dimension_numbers<[1], [0], [0], [1], [0, 0, 1, 1], [], []>} : vector<2x2xf32>, vector<2x32xf32>, vector<2x32xf32> -> vector<2x32xf32>
    %cst_11 = arith.constant dense<0.000000e+00> : vector<2x2xf32>
    %11 = tpu.matmul %4, %5, %cst_11 {dimension_numbers = #tpu.dot_dimension_numbers<[1], [0], [0], [1], [0, 0, 1, 1], [], []>} : vector<2x32xf32>, vector<32x2xf32>, vector<2x2xf32> -> vector<2x2xf32>
    %cst_12 = arith.constant 0.000000e+00 : f32
    %12 = vector.broadcast %cst_12 : f32 to vector<2x2xf32>
    %13 = arith.maximumf %11, %12 : vector<2x2xf32>
    %cst_13 = arith.constant dense<0.000000e+00> : vector<2x32xf32>
    %14 = tpu.matmul %13, %6, %cst_13 {dimension_numbers = #tpu.dot_dimension_numbers<[1], [0], [0], [1], [0, 0, 1, 1], [], []>} : vector<2x2xf32>, vector<2x32xf32>, vector<2x32xf32> -> vector<2x32xf32>
    %15 = arith.addf %10, %14 : vector<2x32xf32>
    %16 = arith.negf %15 : vector<2x32xf32>
    %17 = math.exp %16 : vector<2x32xf32>
    %cst_14 = arith.constant 1.000000e+00 : f32
    %18 = vector.broadcast %cst_14 : f32 to vector<2x32xf32>
    %19 = arith.addf %18, %17 : vector<2x32xf32>
    %20 = arith.divf %18, %19 : vector<2x32xf32>
    %21 = vector.shape_cast %20 : vector<2x32xf32> to vector<1x2x32xf32>
    %c0_15 = arith.constant 0 : index
    %c0_16 = arith.constant 0 : index
    %c0_17 = arith.constant 0 : index
    %22 = vector.load %arg4[%c0_15, %c0_16, %c0_17] : memref<1x2x32xf32, #tpu.memory_space<vmem>>, vector<1x2x32xf32>
    tpu.vector_store %arg4[%c0_15, %c0_16, %c0_17], %21 {strides = array<i32>} : memref<1x2x32xf32, #tpu.memory_space<vmem>>, vector<1x2x32xf32>,
    return
  }
  func.func @transform_0(%arg0: i32) -> (i32, i32, i32) {
    %c0_i32 = arith.constant 0 : i32
    %c0_i32_0 = arith.constant 0 : i32
    %c0_i32_1 = arith.constant 0 : i32
    return %arg0, %c0_i32, %c0_i32_0 : i32, i32, i32
  }
  func.func @transform_1(%arg0: i32) -> (i32, i32) {
    %c0_i32 = arith.constant 0 : i32
    %c0_i32_0 = arith.constant 0 : i32
    %c0_i32_1 = arith.constant 0 : i32
    return %c0_i32, %c0_i32_0 : i32, i32
  }
  func.func @transform_2(%arg0: i32) -> (i32, i32) {
    %c0_i32 = arith.constant 0 : i32
    %c0_i32_0 = arith.constant 0 : i32
    %c0_i32_1 = arith.constant 0 : i32
    return %c0_i32, %c0_i32_0 : i32, i32
  }
  func.func @transform_3(%arg0: i32) -> (i32, i32, i32) {
    %c0_i32 = arith.constant 0 : i32
    %c0_i32_0 = arith.constant 0 : i32
    %c0_i32_1 = arith.constant 0 : i32
    return %arg0, %c0_i32, %c0_i32_0 : i32, i32, i32
  }
}

</mosaic_0001>

<llo_original>
// kernel: tpu_custom_call.1
$region0: #{tpu_custom_call.1}
  #allocation0 [shape = 'u32[]', space=smem, size = 0x4, offset = 0x4, fixed_abs, tag = 'smem constant byte address 0x4 - core index']
  #allocation1 [shape = 'u32[144,128]{1,0:T(1,128)}', space=vmem, size = 0x12000, scoped, tag = 'internal scratch']
  %s0 = inlined_call_operand.hbm [shape: f32[2,32,256], index: 0, kind: input, shape index: {}]
  %s1 = inlined_call_operand.vmem [shape: f32[32,2], index: 1, kind: input, shape index: {}]
  %s2 = inlined_call_operand.vmem [shape: f32[2,32], index: 2, kind: input, shape index: {}]
  %s3 = inlined_call_operand.hbm [shape: f32[1,2,32], index: 3, kind: output, shape index: {}]
  %s4 = sld [smem:[#allocation0]]
  $region26: #{tpu_custom_call.1} parent=0
    _
  %s6 = ssub.s32 1, %s4
  %s7 = scalar_select 0, %s6, %s4
  $region1: #{tpu_custom_call.1} parent=0
    #allocation2 [shape = 'u8[65536]{0}', space=vmem, size = 0x10000, scoped, tag = 'input window, operand 0, single buffered']
    #allocation3 [shape = 's32[1]{0}', space=sflag, size = 0x4, scoped, tag = 'scoped memory for tpu_custom_call.1']
    #allocation4 [shape = 's32[1]{0}', space=sflag, size = 0x4, scoped, tag = 'scoped memory for tpu_custom_call.1']
    #allocation5 [shape = 'u8[1024]{0}', space=vmem, size = 0x400, scoped, tag = 'output window, operand 0, single buffered']
    %8 = vsyncpa [#allocation3], 0
    %9 = vsyncpa [#allocation4], 0
    // Predicated region
    $region2: #{tpu_custom_call.1} parent=1 // pred_check
      _
    $region3: #{tpu_custom_call.1} parent=1 // pred_check_branch
      %11 = sbr.rel (0) target = $region5
    $region4: #{tpu_custom_call.1} parent=1 // pred_region
      %s13 = ssub.s32 2048, 2048
      %14 = vsyncadd [#allocation3], %s13
      %s15 = sshll.u32 [#allocation2], 4
      %s16 = int_to_ptr.vmem [resolvable:$true] %s15
      %21 = dma.hbm_to_vmem [thread:$0]  %s0, 2048, %s16, [#allocation3], 256, 256, 16
    $region5: #{tpu_custom_call.1} parent=1 // pred_fallthru
      _
    // Predicated region
    $region6: #{tpu_custom_call.1} parent=1 // pred_check
      _
    $region7: #{tpu_custom_call.1} parent=1 // pred_check_branch
      %23 = sbr.rel (0) target = $region9
    $region8: #{tpu_custom_call.1} parent=1 // pred_region
      _
    $region9: #{tpu_custom_call.1} parent=1 // pred_fallthru
      _
    // Predicated region
    $region10: #{tpu_custom_call.1} parent=1 // pred_check
      _
    $region11: #{tpu_custom_call.1} parent=1 // pred_check_branch
      %25 = sbr.rel (0) target = $region13
    $region12: #{tpu_custom_call.1} parent=1 // pred_region
      _
    $region13: #{tpu_custom_call.1} parent=1 // pred_fallthru
      _
    // Predicated region
    $region14: #{tpu_custom_call.1} parent=1 // pred_check
      _
    $region15: #{tpu_custom_call.1} parent=1 // pred_check_branch
      %27 = sbr.rel (0) target = $region17
    $region16: #{tpu_custom_call.1} parent=1 // pred_region
      %28 = dma.done [#allocation3], 2048
    $region17: #{tpu_custom_call.1} parent=1 // pred_fallthru
      _
    %v29 = vld [vmem:[#allocation2] sm:$0xff]
    %v30 = vld [vmem:[#allocation2 + $0x8] sm:$0xff]
    %v31 = vld [vmem:[#allocation2 + $0x10] sm:$0xff]
    %v32 = vld [vmem:[#allocation2 + $0x18] sm:$0xff]
    %v33 = vld [vmem:[#allocation2 + $0x20] sm:$0xff]
    %v34 = vld [vmem:[#allocation2 + $0x28] sm:$0xff]
    %v35 = vld [vmem:[#allocation2 + $0x30] sm:$0xff]
    %v36 = vld [vmem:[#allocation2 + $0x38] sm:$0xff]
    %v37 = vld [vmem:[#allocation2 + $0x40] sm:$0xff]
    %v38 = vld [vmem:[#allocation2 + $0x48] sm:$0xff]
    %v39 = vld [vmem:[#allocation2 + $0x50] sm:$0xff]
    %v40 = vld [vmem:[#allocation2 + $0x58] sm:$0xff]
    %v41 = vld [vmem:[#allocation2 + $0x60] sm:$0xff]
    %v42 = vld [vmem:[#allocation2 + $0x68] sm:$0xff]
    %v43 = vld [vmem:[#allocation2 + $0x70] sm:$0xff]
    %v44 = vld [vmem:[#allocation2 + $0x78] sm:$0xff]
    %v45 = vadd.f32 %v29, %v30
    %46 = vadd.xlane.f32.xlu0 %v45
    %v47 = vpop.xlane.xlu0 %46
    %v48 = vadd.f32 %v31, %v32
    %49 = vadd.xlane.f32.xlu0 %v48
    %v50 = vpop.xlane.xlu0 %49
    %v51 = vadd.f32 %v33, %v34
    %52 = vadd.xlane.f32.xlu0 %v51
    %v53 = vpop.xlane.xlu0 %52
    %v54 = vadd.f32 %v35, %v36
    %55 = vadd.xlane.f32.xlu0 %v54
    %v56 = vpop.xlane.xlu0 %55
    %v57 = vadd.f32 %v37, %v38
    %58 = vadd.xlane.f32.xlu0 %v57
    %v59 = vpop.xlane.xlu0 %58
    %v60 = vadd.f32 %v39, %v40
    %61 = vadd.xlane.f32.xlu0 %v60
    %v62 = vpop.xlane.xlu0 %61
    %v63 = vadd.f32 %v41, %v42
    %64 = vadd.xlane.f32.xlu0 %v63
    %v65 = vpop.xlane.xlu0 %64
    %v66 = vadd.f32 %v43, %v44
    %67 = vadd.xlane.f32.xlu0 %v66
    %v68 = vpop.xlane.xlu0 %67
    %v69 = vmul.f32 %v47, 0.00390625
    %v70 = vmul.f32 %v50, 0.00390625
    %v71 = vmul.f32 %v53, 0.00390625
    %v72 = vmul.f32 %v56, 0.00390625
    %v73 = vmul.f32 %v59, 0.00390625
    %v74 = vmul.f32 %v62, 0.00390625
    %v75 = vmul.f32 %v65, 0.00390625
    %v76 = vmul.f32 %v68, 0.00390625
    %v77 = vmax.f32 %v29, %v30
    %78 = vmax.xlane.f32.xlu0 %v77
    %v79 = vpop.xlane.xlu0 %78
    %v80 = vmax.f32 %v31, %v32
    %81 = vmax.xlane.f32.xlu0 %v80
    %v82 = vpop.xlane.xlu0 %81
    %v83 = vmax.f32 %v33, %v34
    %84 = vmax.xlane.f32.xlu0 %v83
    %v85 = vpop.xlane.xlu0 %84
    %v86 = vmax.f32 %v35, %v36
    %87 = vmax.xlane.f32.xlu0 %v86
    %v88 = vpop.xlane.xlu0 %87
    %v89 = vmax.f32 %v37, %v38
    %90 = vmax.xlane.f32.xlu0 %v89
    %v91 = vpop.xlane.xlu0 %90
    %v92 = vmax.f32 %v39, %v40
    %93 = vmax.xlane.f32.xlu0 %v92
    %v94 = vpop.xlane.xlu0 %93
    %v95 = vmax.f32 %v41, %v42
    %96 = vmax.xlane.f32.xlu0 %v95
    %v97 = vpop.xlane.xlu0 %96
    %v98 = vmax.f32 %v43, %v44
    %99 = vmax.xlane.f32.xlu0 %v98
    %v100 = vpop.xlane.xlu0 %99
    %v101 = vld [vmem:[%s1] sm:$0xff]
    %v102 = vld [vmem:[%s1 + $0x8] sm:$0xff]
    %v103 = vld [vmem:[%s1 + $0x10] sm:$0xff]
    %v104 = vld [vmem:[%s1 + $0x18] sm:$0xff]
    %v105 = vld [vmem:[%s2] sm:$0x3]
    %v114 = vlaneseq
    %v115 = vand.u32 %v114, 127
    %v116 = vlaneseq
    %v117 = vshrl.u32 %v116, 7
    %v118 = vsub.s32 %v115, %v117
    %v119 = vrot.slane %v69, %v118
    %v120 = vadd.s32 %v115, 4294967288
    %v121 = vlaneseq
    %v122 = vshrl.u32 %v121, 7
    %v123 = vsub.s32 %v120, %v122
    %v124 = vrot.slane %v70, %v123
    %vm125 = vcmask 130112
    %v126 = vsel %vm125, %v124, %v119
    %v127 = vadd.s32 %v115, 4294967280
    %v128 = vlaneseq
    %v129 = vshrl.u32 %v128, 7
    %v130 = vsub.s32 %v127, %v129
    %v131 = vrot.slane %v71, %v130
    %vm132 = vcmask 195712
    %v133 = vsel %vm132, %v131, %v126
    %v134 = vadd.s32 %v115, 4294967272
    %v135 = vlaneseq
    %v136 = vshrl.u32 %v135, 7
    %v137 = vsub.s32 %v134, %v136
    %v138 = vrot.slane %v72, %v137
    %vm139 = vcmask 261312
    %v140 = vsel %vm139, %v138, %v133
    %v141 = vlaneseq
    %v142 = vshrl.u32 %v141, 7
    %v143 = vsub.s32 %v115, %v142
    %v144 = vrot.slane %v73, %v143
    %v145 = vlaneseq
    %v146 = vshrl.u32 %v145, 7
    %v147 = vsub.s32 %v120, %v146
    %v148 = vrot.slane %v74, %v147
    %v149 = vsel %vm125, %v148, %v144
    %v150 = vlaneseq
    %v151 = vshrl.u32 %v150, 7
    %v152 = vsub.s32 %v127, %v151
    %v153 = vrot.slane %v75, %v152
    %v154 = vsel %vm132, %v153, %v149
    %v155 = vlaneseq
    %v156 = vshrl.u32 %v155, 7
    %v157 = vsub.s32 %v134, %v156
    %v158 = vrot.slane %v76, %v157
    %v159 = vsel %vm139, %v158, %v154
    %vm160 = vcmask 1041409
    %v161 = vsel %vm160, %v159, %v140
    %vm162 = vcmask 261120
    %v163 = vsel %vm162, %v161, 0
    %165 = vmatprep.subr.mxu0 0.0
    %166 = vmatpush1.msra.mxu0 %v101
    %167 = vmatprep.subr.mxu0 0.0
    %168 = vmatpush1.msra.mxu0 %v102
    %169 = vmatprep.subr.mxu0 0.0
    %170 = vmatpush1.msra.mxu0 %v103
    %171 = vmatprep.subr.mxu0 0.0
    %172 = vmatpush1.msra.mxu0 %v104
    %173 = vmatprep.subr.mxu0 0.0
    %174 = vmatpush1.msra.mxu0 0.0
    %175 = vmatprep.subr.mxu0 0.0
    %176 = vmatpush1.msra.mxu0 0.0
    %177 = vmatprep.subr.mxu0 0.0
    %178 = vmatpush1.msra.mxu0 0.0
    %179 = vmatprep.subr.mxu0 0.0
    %180 = vmatpush1.msra.mxu0 0.0
    %181 = vmatprep.subr.mxu0 0.0
    %182 = vmatpush1.msra.mxu0 0.0
    %183 = vmatprep.subr.mxu0 0.0
    %184 = vmatpush1.msra.mxu0 0.0
    %185 = vmatprep.subr.mxu0 0.0
    %186 = vmatpush1.msra.mxu0 0.0
    %187 = vmatprep.subr.mxu0 0.0
    %188 = vmatpush1.msra.mxu0 0.0
    %189 = vmatprep.subr.mxu0 0.0
    %190 = vmatpush1.msra.mxu0 0.0
    %191 = vmatprep.subr.mxu0 0.0
    %192 = vmatpush1.msra.mxu0 0.0
    %193 = vmatprep.subr.mxu0 0.0
    %194 = vmatpush1.msra.mxu0 0.0
    %195 = vmatprep.subr.mxu0 0.0
    %196 = vmatpush1.msra.mxu0 0.0
    %197 = vmatprep.subr.mxu0 0.0
    %198 = vmatpush1.msra.mxu0 0.0
    %199 = vmatprep.subr.mxu0 0.0
    %200 = vmatpush1.msra.mxu0 0.0
    %201 = vmatprep.subr.mxu0 0.0
    %202 = vmatpush1.msra.mxu0 0.0
    %203 = vmatprep.subr.mxu0 0.0
    %204 = vmatpush1.msra.mxu0 0.0
    %205 = vmatprep.subr.mxu0 0.0
    %206 = vmatpush1.msra.mxu0 0.0
    %207 = vmatprep.subr.mxu0 0.0
    %208 = vmatpush1.msra.mxu0 0.0
    %209 = vmatprep.subr.mxu0 0.0
    %210 = vmatpush1.msra.mxu0 0.0
    %211 = vmatprep.subr.mxu0 0.0
    %212 = vmatpush1.msra.mxu0 0.0
    %213 = vmatprep.subr.mxu0 0.0
    %214 = vmatpush1.msra.mxu0 0.0
    %215 = vmatprep.subr.mxu0 0.0
    %216 = vmatpush1.msra.mxu0 0.0
    %217 = vmatprep.subr.mxu0 0.0
    %218 = vmatpush1.msra.mxu0 0.0
    %219 = vmatprep.subr.mxu0 0.0
    %220 = vmatpush1.msra.mxu0 0.0
    %221 = vmatprep.subr.mxu0 0.0
    %222 = vmatpush1.msra.mxu0 0.0
    %223 = vmatprep.subr.mxu0 0.0
    %224 = vmatpush1.msra.mxu0 0.0
    %225 = vmatprep.subr.mxu0 0.0
    %226 = vmatpush1.msra.mxu0 0.0
    %227 = vmatprep.subr.mxu0 0.0
    %228 = vmatpush1.msra.mxu0 0.0
    %229 = vmatprep.mubr.f32.mxu0 0.0
    %230 = vmatmul.mubr.f32.gmra.mrb[0].mxu0 %v163
    %v231 = vpop.f32.mrb[0].mxu0
    %v232 = vadd.f32 0.0, %v231
    %v233 = vpop.f32.mrb[0].mxu0
    %234 = vdwg.mxu0
    %v235 = vmax.f32 %v232, 0.0
    %v244 = vlaneseq
    %v245 = vshrl.u32 %v244, 7
    %v246 = vsub.s32 %v115, %v245
    %v247 = vrot.slane %v79, %v246
    %v248 = vlaneseq
    %v249 = vshrl.u32 %v248, 7
    %v250 = vsub.s32 %v120, %v249
    %v251 = vrot.slane %v82, %v250
    %v252 = vsel %vm125, %v251, %v247
    %v253 = vlaneseq
    %v254 = vshrl.u32 %v253, 7
    %v255 = vsub.s32 %v127, %v254
    %v256 = vrot.slane %v85, %v255
    %v257 = vsel %vm132, %v256, %v252
    %v258 = vlaneseq
    %v259 = vshrl.u32 %v258, 7
    %v260 = vsub.s32 %v134, %v259
    %v261 = vrot.slane %v88, %v260
    %v262 = vsel %vm139, %v261, %v257
    %v263 = vlaneseq
    %v264 = vshrl.u32 %v263, 7
    %v265 = vsub.s32 %v115, %v264
    %v266 = vrot.slane %v91, %v265
    %v267 = vlaneseq
    %v268 = vshrl.u32 %v267, 7
    %v269 = vsub.s32 %v120, %v268
    %v270 = vrot.slane %v94, %v269
    %v271 = vsel %vm125, %v270, %v266
    %v272 = vlaneseq
    %v273 = vshrl.u32 %v272, 7
    %v274 = vsub.s32 %v127, %v273
    %v275 = vrot.slane %v97, %v274
    %v276 = vsel %vm132, %v275, %v271
    %v277 = vlaneseq
    %v278 = vshrl.u32 %v277, 7
    %v279 = vsub.s32 %v134, %v278
    %v280 = vrot.slane %v100, %v279
    %v281 = vsel %vm139, %v280, %v276
    %v282 = vsel %vm160, %v281, %v262
    %v283 = vsel %vm162, %v282, 0
    %285 = vmatprep.subr.mxu0 0.0
    %286 = vmatpush1.msra.mxu0 %v101
    %287 = vmatprep.subr.mxu0 0.0
    %288 = vmatpush1.msra.mxu0 %v102
    %289 = vmatprep.subr.mxu0 0.0
    %290 = vmatpush1.msra.mxu0 %v103
    %291 = vmatprep.subr.mxu0 0.0
    %292 = vmatpush1.msra.mxu0 %v104
    %293 = vmatprep.subr.mxu0 0.0
    %294 = vmatpush1.msra.mxu0 0.0
    %295 = vmatprep.subr.mxu0 0.0
    %296 = vmatpush1.msra.mxu0 0.0
    %297 = vmatprep.subr.mxu0 0.0
    %298 = vmatpush1.msra.mxu0 0.0
    %299 = vmatprep.subr.mxu0 0.0
    %300 = vmatpush1.msra.mxu0 0.0
    %301 = vmatprep.subr.mxu0 0.0
    %302 = vmatpush1.msra.mxu0 0.0
    %303 = vmatprep.subr.mxu0 0.0
    %304 = vmatpush1.msra.mxu0 0.0
    %305 = vmatprep.subr.mxu0 0.0
    %306 = vmatpush1.msra.mxu0 0.0
    %307 = vmatprep.subr.mxu0 0.0
    %308 = vmatpush1.msra.mxu0 0.0
    %309 = vmatprep.subr.mxu0 0.0
    %310 = vmatpush1.msra.mxu0 0.0
    %311 = vmatprep.subr.mxu0 0.0
    %312 = vmatpush1.msra.mxu0 0.0
    %313 = vmatprep.subr.mxu0 0.0
    %314 = vmatpush1.msra.mxu0 0.0
    %315 = vmatprep.subr.mxu0 0.0
    %316 = vmatpush1.msra.mxu0 0.0
    %317 = vmatprep.subr.mxu0 0.0
    %318 = vmatpush1.msra.mxu0 0.0
    %319 = vmatprep.subr.mxu0 0.0
    %320 = vmatpush1.msra.mxu0 0.0
    %321 = vmatprep.subr.mxu0 0.0
    %322 = vmatpush1.msra.mxu0 0.0
    %323 = vmatprep.subr.mxu0 0.0
    %324 = vmatpush1.msra.mxu0 0.0
    %325 = vmatprep.subr.mxu0 0.0
    %326 = vmatpush1.msra.mxu0 0.0
    %327 = vmatprep.subr.mxu0 0.0
    %328 = vmatpush1.msra.mxu0 0.0
    %329 = vmatprep.subr.mxu0 0.0
    %330 = vmatpush1.msra.mxu0 0.0
    %331 = vmatprep.subr.mxu0 0.0
    %332 = vmatpush1.msra.mxu0 0.0
    %333 = vmatprep.subr.mxu0 0.0
    %334 = vmatpush1.msra.mxu0 0.0
    %335 = vmatprep.subr.mxu0 0.0
    %336 = vmatpush1.msra.mxu0 0.0
    %337 = vmatprep.subr.mxu0 0.0
    %338 = vmatpush1.msra.mxu0 0.0
    %339 = vmatprep.subr.mxu0 0.0
    %340 = vmatpush1.msra.mxu0 0.0
    %341 = vmatprep.subr.mxu0 0.0
    %342 = vmatpush1.msra.mxu0 0.0
    %343 = vmatprep.subr.mxu0 0.0
    %344 = vmatpush1.msra.mxu0 0.0
    %345 = vmatprep.subr.mxu0 0.0
    %346 = vmatpush1.msra.mxu0 0.0
    %347 = vmatprep.subr.mxu0 0.0
    %348 = vmatpush1.msra.mxu0 0.0
    %349 = vmatprep.mubr.f32.mxu0 0.0
    %350 = vmatmul.mubr.f32.gmra.mrb[0].mxu0 %v283
    %v351 = vpop.f32.mrb[0].mxu0
    %v352 = vadd.f32 0.0, %v351
    %v353 = vpop.f32.mrb[0].mxu0
    %354 = vdwg.mxu0
    %v355 = vmax.f32 %v352, 0.0
    %vm356 = vcmask 15360
    %v358 = vsel %vm356, %v355, 0
    %vm360 = vcmask 1041408
    %v362 = vsel %vm360, %v105, 0
    %364 = vmatprep.subr.mxu0 0.0
    %365 = vmatpush1.msra.mxu0 %v362
    %366 = vmatprep.subr.mxu0 0.0
    %367 = vmatpush1.msra.mxu0 0.0
    %368 = vmatprep.subr.mxu0 0.0
    %369 = vmatpush1.msra.mxu0 0.0
    %370 = vmatprep.subr.mxu0 0.0
    %371 = vmatpush1.msra.mxu0 0.0
    %372 = vmatprep.subr.mxu0 0.0
    %373 = vmatpush1.msra.mxu0 0.0
    %374 = vmatprep.subr.mxu0 0.0
    %375 = vmatpush1.msra.mxu0 0.0
    %376 = vmatprep.subr.mxu0 0.0
    %377 = vmatpush1.msra.mxu0 0.0
    %378 = vmatprep.subr.mxu0 0.0
    %379 = vmatpush1.msra.mxu0 0.0
    %380 = vmatprep.subr.mxu0 0.0
    %381 = vmatpush1.msra.mxu0 0.0
    %382 = vmatprep.subr.mxu0 0.0
    %383 = vmatpush1.msra.mxu0 0.0
    %384 = vmatprep.subr.mxu0 0.0
    %385 = vmatpush1.msra.mxu0 0.0
    %386 = vmatprep.subr.mxu0 0.0
    %387 = vmatpush1.msra.mxu0 0.0
    %388 = vmatprep.subr.mxu0 0.0
    %389 = vmatpush1.msra.mxu0 0.0
    %390 = vmatprep.subr.mxu0 0.0
    %391 = vmatpush1.msra.mxu0 0.0
    %392 = vmatprep.subr.mxu0 0.0
    %393 = vmatpush1.msra.mxu0 0.0
    %394 = vmatprep.subr.mxu0 0.0
    %395 = vmatpush1.msra.mxu0 0.0
    %396 = vmatprep.subr.mxu0 0.0
    %397 = vmatpush1.msra.mxu0 0.0
    %398 = vmatprep.subr.mxu0 0.0
    %399 = vmatpush1.msra.mxu0 0.0
    %400 = vmatprep.subr.mxu0 0.0
    %401 = vmatpush1.msra.mxu0 0.0
    %402 = vmatprep.subr.mxu0 0.0
    %403 = vmatpush1.msra.mxu0 0.0
    %404 = vmatprep.subr.mxu0 0.0
    %405 = vmatpush1.msra.mxu0 0.0
    %406 = vmatprep.subr.mxu0 0.0
    %407 = vmatpush1.msra.mxu0 0.0
    %408 = vmatprep.subr.mxu0 0.0
    %409 = vmatpush1.msra.mxu0 0.0
    %410 = vmatprep.subr.mxu0 0.0
    %411 = vmatpush1.msra.mxu0 0.0
    %412 = vmatprep.subr.mxu0 0.0
    %413 = vmatpush1.msra.mxu0 0.0
    %414 = vmatprep.subr.mxu0 0.0
    %415 = vmatpush1.msra.mxu0 0.0
    %416 = vmatprep.subr.mxu0 0.0
    %417 = vmatpush1.msra.mxu0 0.0
    %418 = vmatprep.subr.mxu0 0.0
    %419 = vmatpush1.msra.mxu0 0.0
    %420 = vmatprep.subr.mxu0 0.0
    %421 = vmatpush1.msra.mxu0 0.0
    %422 = vmatprep.subr.mxu0 0.0
    %423 = vmatpush1.msra.mxu0 0.0
    %424 = vmatprep.subr.mxu0 0.0
    %425 = vmatpush1.msra.mxu0 0.0
    %426 = vmatprep.subr.mxu0 0.0
    %427 = vmatpush1.msra.mxu0 0.0
    %428 = vmatprep.mubr.f32.mxu0 0.0
    %429 = vmatmul.mubr.f32.gmra.mrb[0].mxu0 %v358
    %v430 = vpop.f32.mrb[0].mxu0
    %v431 = vadd.f32 0.0, %v430
    %v432 = vpop.f32.mrb[0].mxu0
    %433 = vdwg.mxu0
    %v435 = vsel %vm356, %v235, 0
    %437 = vmatprep.subr.mxu0 0.0
    %438 = vmatpush1.msra.mxu0 %v362
    %439 = vmatprep.subr.mxu0 0.0
    %440 = vmatpush1.msra.mxu0 0.0
    %441 = vmatprep.subr.mxu0 0.0
    %442 = vmatpush1.msra.mxu0 0.0
    %443 = vmatprep.subr.mxu0 0.0
    %444 = vmatpush1.msra.mxu0 0.0
    %445 = vmatprep.subr.mxu0 0.0
    %446 = vmatpush1.msra.mxu0 0.0
    %447 = vmatprep.subr.mxu0 0.0
    %448 = vmatpush1.msra.mxu0 0.0
    %449 = vmatprep.subr.mxu0 0.0
    %450 = vmatpush1.msra.mxu0 0.0
    %451 = vmatprep.subr.mxu0 0.0
    %452 = vmatpush1.msra.mxu0 0.0
    %453 = vmatprep.subr.mxu0 0.0
    %454 = vmatpush1.msra.mxu0 0.0
    %455 = vmatprep.subr.mxu0 0.0
    %456 = vmatpush1.msra.mxu0 0.0
    %457 = vmatprep.subr.mxu0 0.0
    %458 = vmatpush1.msra.mxu0 0.0
    %459 = vmatprep.subr.mxu0 0.0
    %460 = vmatpush1.msra.mxu0 0.0
    %461 = vmatprep.subr.mxu0 0.0
    %462 = vmatpush1.msra.mxu0 0.0
    %463 = vmatprep.subr.mxu0 0.0
    %464 = vmatpush1.msra.mxu0 0.0
    %465 = vmatprep.subr.mxu0 0.0
    %466 = vmatpush1.msra.mxu0 0.0
    %467 = vmatprep.subr.mxu0 0.0
    %468 = vmatpush1.msra.mxu0 0.0
    %469 = vmatprep.subr.mxu0 0.0
    %470 = vmatpush1.msra.mxu0 0.0
    %471 = vmatprep.subr.mxu0 0.0
    %472 = vmatpush1.msra.mxu0 0.0
    %473 = vmatprep.subr.mxu0 0.0
    %474 = vmatpush1.msra.mxu0 0.0
    %475 = vmatprep.subr.mxu0 0.0
    %476 = vmatpush1.msra.mxu0 0.0
    %477 = vmatprep.subr.mxu0 0.0
    %478 = vmatpush1.msra.mxu0 0.0
    %479 = vmatprep.subr.mxu0 0.0
    %480 = vmatpush1.msra.mxu0 0.0
    %481 = vmatprep.subr.mxu0 0.0
    %482 = vmatpush1.msra.mxu0 0.0
    %483 = vmatprep.subr.mxu0 0.0
    %484 = vmatpush1.msra.mxu0 0.0
    %485 = vmatprep.subr.mxu0 0.0
    %486 = vmatpush1.msra.mxu0 0.0
    %487 = vmatprep.subr.mxu0 0.0
    %488 = vmatpush1.msra.mxu0 0.0
    %489 = vmatprep.subr.mxu0 0.0
    %490 = vmatpush1.msra.mxu0 0.0
    %491 = vmatprep.subr.mxu0 0.0
    %492 = vmatpush1.msra.mxu0 0.0
    %493 = vmatprep.subr.mxu0 0.0
    %494 = vmatpush1.msra.mxu0 0.0
    %495 = vmatprep.subr.mxu0 0.0
    %496 = vmatpush1.msra.mxu0 0.0
    %497 = vmatprep.subr.mxu0 0.0
    %498 = vmatpush1.msra.mxu0 0.0
    %499 = vmatprep.subr.mxu0 0.0
    %500 = vmatpush1.msra.mxu0 0.0
    %501 = vmatprep.mubr.f32.mxu0 0.0
    %502 = vmatmul.mubr.f32.gmra.mrb[0].mxu0 %v435
    %v503 = vpop.f32.mrb[0].mxu0
    %v504 = vadd.f32 %v431, %v503
    %v505 = vpop.f32.mrb[0].mxu0
    %506 = vdwg.mxu0
    %v507 = vxor.u32 %v504, 2147483648
    %v508 = vmul.f32 %v507, 1.442695
    %v509 = vpow.pop %v508
    %v510 = vadd.f32 %v509, 1.0
    %v511 = vrcp.pop %v510
    %v512 = vmul.f32 1.0, %v511
    %vm513 = vcmask 254976
    %514 = vst.msk [vmem:[#allocation5] sm:$0x3] %vm513, %v512
    // Predicated region
    $region18: #{tpu_custom_call.1} parent=1 // pred_check
      _
    $region19: #{tpu_custom_call.1} parent=1 // pred_check_branch
      %516 = sbr.rel (0) target = $region21
    $region20: #{tpu_custom_call.1} parent=1 // pred_region
      %s518 = ssub.s32 32, 32
      %519 = vsyncadd [#allocation4], %s518
      %s521 = sshll.u32 [#allocation5], 4
      %s522 = int_to_ptr.vmem [resolvable:$true] %s521
      %524 = dma.vmem_to_hbm [thread:$0]  %s522, 32, %s3, [#allocation4]
    $region21: #{tpu_custom_call.1} parent=1 // pred_fallthru
      _
    // Predicated region
    $region22: #{tpu_custom_call.1} parent=1 // pred_check
      _
    $region23: #{tpu_custom_call.1} parent=1 // pred_check_branch
      %526 = sbr.rel (0) target = $region25
    $region24: #{tpu_custom_call.1} parent=1 // pred_region
      %527 = dma.done [#allocation4], 32
    $region25: #{tpu_custom_call.1} parent=1 // pred_fallthru
      _
    %528 = vsyncpa [#allocation3], 1
    %529 = vsyncpa [#allocation4], 1

</llo_original>
